<compile_context>
chip_gen: v7x
topology: tpu7x:2x2x1
jax: 0.10.0
libtpu: 0.0.40
codegen_flags: <defaults>
</compile_context>

<pallas_src>
import jax
import jax.numpy as jnp
from jax import lax
from jax.experimental import pallas as pl
from jax.experimental.pallas import tpu as pltpu

LAMBDA_CLASS = 1.0
LAMBDA_NOOBJ = 10.0
LAMBDA_OBJ = 1.0
LAMBDA_BOX = 10.0

_LANES = 128
_MAX_ROW_TILE = 512          # hard cap on rows-of-128 per grid step
_TARGET_ROW_STEPS = 3        # keep >= 3 row steps so the prologue DMA is hidden
_CLASS_CACHE_LIMIT = 12      # cache class planes in vregs up to this many classes


def _cdiv(a, b):
    return -(-a // b)


def _round_up(a, b):
    return _cdiv(a, b) * b


def _vmem_capacity_bytes():
    # Per-generation VMEM (v5e/v6e: 128 MiB, v7x: 64 MiB).  Fall back to the
    # smallest (v7x) figure if the query is unavailable.
    try:
        return int(pltpu.get_tpu_info().vmem_capacity_bytes)
    except Exception:
        return 64 << 20


def _make_yolo_kernel(num_classes, row_tile, row_chunk, n_chunks,
                      total_cells, needs_mask):
    """Kernel specialized on static (C, row_tile, row_chunk, n_chunks, M, mask)."""

    def kernel(pred_ref, targ_ref, anc_ref, out_ref):
        # pred_ref: (Fp, row_tile, 128) VMEM   targ_ref: (6, row_tile, 128) VMEM
        # anc_ref : (A, 4) SMEM = [w, h, 1/w, 1/h]
        # out_ref : (8, 128) lane-dense partial sums for this (anchor, row-tile)
        a = pl.program_id(0)
        aw = anc_ref[a, 0]
        ah = anc_ref[a, 1]
        inv_aw = anc_ref[a, 2]
        inv_ah = anc_ref[a, 3]
        base_cell = pl.program_id(1) * (row_tile * _LANES)

        def chunk(c, carry):
            nc_a, nb_a, oc_a, ob_a, bx_a, ce_a = carry
            off = c * row_chunk
            if not isinstance(off, int):
                off = pl.multiple_of(off, row_chunk)
            rs = pl.ds(off, row_chunk)

            t_obj = targ_ref[0, rs, :].astype(jnp.float32)
            obj = t_obj == 1.0
            noobj = t_obj == 0.0
            if needs_mask:
                # tail rows past the real cell count (128-pad / row-tile
                # overhang garbage) contribute to nothing
                cell = (base_cell + off * _LANES
                        + lax.broadcasted_iota(jnp.int32, (row_chunk, _LANES), 0) * _LANES
                        + lax.broadcasted_iota(jnp.int32, (row_chunk, _LANES), 1))
                valid = cell < total_cells
                obj = jnp.logical_and(obj, valid)
                noobj = jnp.logical_and(noobj, valid)

            # shared stable BCE-with-logits base: max(x,0) + log1p(exp(-|x|))
            x = pred_ref[0, rs, :].astype(jnp.float32)
            bce_base = jnp.maximum(x, 0.0) + jnp.log1p(jnp.exp(-jnp.abs(x)))
            noobj_bce = jnp.where(noobj, bce_base, 0.0)       # y == 0 cells

            # ---- box decoding (sigmoid via EUP exp + vrcp) ----------------
            p1 = pred_ref[1, rs, :].astype(jnp.float32)
            p2 = pred_ref[2, rs, :].astype(jnp.float32)
            p3 = pred_ref[3, rs, :].astype(jnp.float32)
            p4 = pred_ref[4, rs, :].astype(jnp.float32)
            px = pl.reciprocal(1.0 + jnp.exp(-p1), approx=True)
            py = pl.reciprocal(1.0 + jnp.exp(-p2), approx=True)
            pw = jnp.exp(p3) * aw
            ph = jnp.exp(p4) * ah

            tx = targ_ref[1, rs, :].astype(jnp.float32)
            ty = targ_ref[2, rs, :].astype(jnp.float32)
            tw = targ_ref[3, rs, :].astype(jnp.float32)
            th = targ_ref[4, rs, :].astype(jnp.float32)

            # midpoint-format IoU
            # TODO(synk): intersection_over_union assumed to use "midpoint" box format.
            iw = jnp.maximum(jnp.minimum(px + 0.5 * pw, tx + 0.5 * tw) -
                             jnp.maximum(px - 0.5 * pw, tx - 0.5 * tw), 0.0)
            ih = jnp.maximum(jnp.minimum(py + 0.5 * ph, ty + 0.5 * th) -
                             jnp.maximum(py - 0.5 * ph, ty - 0.5 * th), 0.0)
            inter = iw * ih
            union = jnp.abs(pw * ph) + jnp.abs(tw * th) - inter + 1e-6
            iou = inter * pl.reciprocal(union, approx=True)

            # ---- object loss: BCE-with-logits vs (detached) IoU -----------
            obj_bce = jnp.where(obj, bce_base - x * iou, 0.0)

            # ---- box MSE (log operand masked -> no NaN on ignored cells) --
            tlw = jnp.log(1e-6 + jnp.where(obj, tw, aw) * inv_aw)
            tlh = jnp.log(1e-6 + jnp.where(obj, th, ah) * inv_ah)
            sq = ((px - tx) ** 2 + (py - ty) ** 2 +
                  (p3 - tlw) ** 2 + (p4 - tlh) ** 2)
            box_sq = jnp.where(obj, sq, 0.0)

            # ---- classification cross entropy (each plane read once) ------
            label = targ_ref[5, rs, :].astype(jnp.float32)
            if num_classes <= _CLASS_CACHE_LIMIT:
                logits = [pred_ref[5 + k, rs, :].astype(jnp.float32)
                          for k in range(num_classes)]
                m = logits[0]
                for lk in logits[1:]:
                    m = jnp.maximum(m, lk)
                ssum = jnp.zeros_like(m)
                picked = jnp.zeros_like(m)
                for k, lk in enumerate(logits):
                    ssum = ssum + jnp.exp(lk - m)
                    picked = picked + jnp.where(label == float(k), lk, 0.0)
            else:
                lk = pred_ref[5, rs, :].astype(jnp.float32)
                m = lk
                ssum = jnp.ones_like(lk)
                picked = jnp.where(label == 0.0, lk, 0.0)
                for k in range(1, num_classes):
                    lk = pred_ref[5 + k, rs, :].astype(jnp.float32)
                    m_new = jnp.maximum(m, lk)
                    ssum = ssum * jnp.exp(m - m_new) + jnp.exp(lk - m_new)
                    picked = picked + jnp.where(label == float(k), lk, 0.0)
                    m = m_new
            cls_ce = jnp.where(obj, (m + jnp.log(ssum)) - picked, 0.0)

            return (nc_a + noobj.astype(jnp.float32),
                    nb_a + noobj_bce,
                    oc_a + obj.astype(jnp.float32),
                    ob_a + obj_bce,
                    bx_a + box_sq,
                    ce_a + cls_ce)

        zero = jnp.zeros((row_chunk, _LANES), jnp.float32)
        carry = (zero, zero, zero, zero, zero, zero)
        if n_chunks <= 2:
            for c in range(n_chunks):
                carry = chunk(c, carry)
        else:
            carry = lax.fori_loop(0, n_chunks, chunk, carry, unroll=2)

        # one sublane reduce per quantity per grid step, one full-block store
        rows_out = [jnp.sum(v, axis=0, keepdims=True) for v in carry]
        rows_out.append(jnp.zeros((8 - len(rows_out), _LANES), jnp.float32))
        out_ref[...] = jnp.concatenate(rows_out, axis=0)

    return kernel


def yolo_loss(predictions, target, anchors):
    B, A, S1, S2, Fp = predictions.shape
    C = Fp - 5
    M = B * S1 * S2                                  # cells per anchor

    # Tiny anchor table (w, h, 1/w, 1/h) -> SMEM; no O(N) broadcast input.
    anchors = anchors.astype(jnp.float32)
    anc_tab = jnp.concatenate([anchors, 1.0 / anchors], axis=1)      # (A, 4)

    # Single relayout pass to per-anchor, feature-major planes (A, F, cells).
    # Inputs keep their storage dtype (bf16 would halve HBM traffic); the
    # per-chunk cast to f32 happens inside the kernel.
    # TODO(synk): if the detector head can emit (A, F, cells) directly (or
    # allow_input_fusion proves safe for this transpose), this pass disappears.
    pred_fm = jnp.transpose(predictions, (1, 4, 0, 2, 3)).reshape(A, Fp, M)
    targ_fm = jnp.transpose(target, (1, 4, 0, 2, 3)).reshape(A, 6, M)

    # Pad only to the next multiple of 128 (needed for the (rows, 128) view);
    # the row-tile tail is masked in-kernel instead of padded in HBM.
    m_pad = _round_up(M, _LANES)
    if m_pad != M:
        pred_fm = jnp.pad(pred_fm, ((0, 0), (0, 0), (0, m_pad - M)))
        targ_fm = jnp.pad(targ_fm, ((0, 0), (0, 0), (0, m_pad - M)))
    rows = m_pad // _LANES
    pred_pl = pred_fm.reshape(A, Fp, rows, _LANES)
    targ_pl = targ_fm.reshape(A, 6, rows, _LANES)

    # Row tiling: derive VMEM budget from the device (v7x: 64 MiB physical,
    # v5e/v6e: 128 MiB) and keep >= _TARGET_ROW_STEPS steps along the row axis.
    p_isz = jnp.dtype(pred_pl.dtype).itemsize
    t_isz = jnp.dtype(targ_pl.dtype).itemsize
    align = 8
    if p_isz <= 2 or t_isz <= 2:
        align = 16
    if p_isz == 1 or t_isz == 1:
        align = 32
    bytes_per_row = (Fp * p_isz + 6 * t_isz) * _LANES * 2      # both inputs, 2 bufs
    vmem_cap = _vmem_capacity_bytes()
    input_budget = min(48 << 20, int(vmem_cap * 0.45))
    tr_cap = max(align, (input_budget // bytes_per_row) // align * align)
    if rows <= align:
        row_tile = rows                               # full-dim block
    else:
        want = _round_up(_cdiv(rows, _TARGET_ROW_STEPS), align)
        row_tile = max(align, min(_MAX_ROW_TILE, tr_cap, want))
    n_r = _cdiv(rows, row_tile)
    row_chunk = min(align, row_tile)
    n_chunks = _cdiv(row_tile, row_chunk)
    needs_mask = (m_pad != M) or (n_r * row_tile != rows)

    vmem_limit = row_tile * bytes_per_row + (16 << 20)          # + headroom
    vmem_limit = int(max(16 << 20, min(vmem_cap - (4 << 20), vmem_limit)))

    kernel = _make_yolo_kernel(C, row_tile, row_chunk, n_chunks, M, needs_mask)

    sums = pl.pallas_call(
        kernel,
        out_shape=jax.ShapeDtypeStruct((A, n_r, 8, _LANES), jnp.float32),
        grid_spec=pltpu.PrefetchScalarGridSpec(
            num_scalar_prefetch=0,
            grid=(A, n_r),
            in_specs=[
                pl.BlockSpec((None, Fp, row_tile, _LANES),
                             lambda a, r: (a, 0, r, 0)),
                pl.BlockSpec((None, 6, row_tile, _LANES),
                             lambda a, r: (a, 0, r, 0)),
                pl.BlockSpec(memory_space=pltpu.MemorySpace.SMEM),
            ],
            # each (anchor, row-tile) step owns its own output block: no
            # cross-step accumulation, both axes shard across v7x's 2 cores
            out_specs=pl.BlockSpec((None, None, 8, _LANES),
                                   lambda a, r: (a, r, 0, 0)),
        ),
        compiler_params=pltpu.CompilerParams(
            dimension_semantics=("parallel", "parallel"),
            vmem_limit_bytes=vmem_limit),
    )(pred_pl, targ_pl, anc_tab)

    s = jnp.sum(sums, axis=(0, 1, 3))                 # (8,)
    noobj_cnt, noobj_sum = s[0], s[1]
    obj_cnt, obj_sum = s[2], s[3]
    box_sum, cls_sum = s[4], s[5]

    # Means mirror PyTorch exactly (mean over an empty selection -> nan,
    # same as nn.BCEWithLogitsLoss / nn.MSELoss on empty tensors).
    noobj_loss = noobj_sum / noobj_cnt               # mean over no-object cells
    object_loss = obj_sum / obj_cnt                  # mean over object cells
    box_loss = box_sum / (4.0 * obj_cnt)             # MSE mean over 4 coords/cell
    cls_loss = cls_sum / obj_cnt                     # CE mean over object cells

    return (LAMBDA_BOX * box_loss + LAMBDA_OBJ * object_loss +
            LAMBDA_NOOBJ * noobj_loss + LAMBDA_CLASS * cls_loss)


def _make_inputs(key, B, A, S, C):
    Fp = 5 + C
    k1, k2, k3, k4, k5 = jax.random.split(key, 5)
    predictions = jax.random.normal(k1, (B, A, S, S, Fp), dtype=jnp.float32)
    # objectness flag in {-1 (ignore), 0 (no object), 1 (object)}
    u = jax.random.uniform(k2, (B, A, S, S))
    obj_flag = jnp.where(u < 0.15, 1.0, jnp.where(u < 0.9, 0.0, -1.0))
    xy = jax.random.uniform(k3, (B, A, S, S, 2))
    wh = jax.random.uniform(k4, (B, A, S, S, 2), minval=0.1, maxval=2.0)
    cls = jax.random.randint(k5, (B, A, S, S, 1), 0, C).astype(jnp.float32)
    target = jnp.concatenate([obj_flag[..., None], xy, wh, cls], axis=-1)
    return predictions, target


if __name__ == "__main__":
    key = jax.random.PRNGKey(0)
    anchors = jnp.array([[1.0, 1.5], [2.0, 1.0], [0.5, 0.75]],
                        dtype=jnp.float32)
    loss_fn = jax.jit(yolo_loss)

    # small case (single row tile, no tail mask)
    predictions, target = _make_inputs(key, B=2, A=3, S=8, C=4)
    loss = jax.block_until_ready(loss_fn(predictions, target, anchors))
    assert bool(jnp.isfinite(loss)), f"non-finite loss: {loss}"

    # realistic-grid case (exercises fori_loop chunking, multi-step row axis
    # and the in-kernel tail mask: 4*52*52 cells is not a multiple of 128)
    predictions2, target2 = _make_inputs(jax.random.PRNGKey(1), B=4, A=3, S=52, C=4)
    loss2 = jax.block_until_ready(loss_fn(predictions2, target2, anchors))
    assert bool(jnp.isfinite(loss2)), f"non-finite loss: {loss2}"

    print("KERNEL_OK")
</pallas_src>

<mosaic_0001>
module attributes {stable_mosaic.version = 11 : i64} {
  func.func @kernel(%arg0: i32, %arg1: i32, %arg2: memref<1x9x1x128xf32, #tpu.memory_space<vmem>>, %arg3: memref<1x6x1x128xf32, #tpu.memory_space<vmem>>, %arg4: memref<3x4xf32, #tpu.memory_space<smem>>, %arg5: memref<1x1x8x128xf32, #tpu.memory_space<vmem>>) attributes {dimension_semantics = [#tpu.dimension_semantics<parallel>, #tpu.dimension_semantics<parallel>], iteration_bounds = array<i64: 3, 1>, scalar_prefetch = 0 : i64, scratch_operands = 0 : i64, tpu.core_type = #tpu.core_type<tc>, window_params = [{transform_indices = @transform_0, window_bounds = array<i64: 1, 9, 1, 128>}, {transform_indices = @transform_1, window_bounds = array<i64: 1, 6, 1, 128>}, {transform_indices = @transform_2, window_bounds = array<i64: 3, 4>}, {transform_indices = @transform_3, window_bounds = array<i64: 1, 1, 8, 128>}]} {
    %0 = arith.index_cast %arg0 : i32 to index
    %c0 = arith.constant 0 : index
    %1 = memref.load %arg4[%0, %c0] : memref<3x4xf32, #tpu.memory_space<smem>>
    %2 = arith.index_cast %arg0 : i32 to index
    %c1 = arith.constant 1 : index
    %3 = memref.load %arg4[%2, %c1] : memref<3x4xf32, #tpu.memory_space<smem>>
    %4 = arith.index_cast %arg0 : i32 to index
    %c2 = arith.constant 2 : index
    %5 = memref.load %arg4[%4, %c2] : memref<3x4xf32, #tpu.memory_space<smem>>
    %6 = arith.index_cast %arg0 : i32 to index
    %c3 = arith.constant 3 : index
    %7 = memref.load %arg4[%6, %c3] : memref<3x4xf32, #tpu.memory_space<smem>>
    %cst = arith.constant 0.000000e+00 : f32
    %8 = vector.broadcast %cst : f32 to vector<1x128xf32>
    %c0_0 = arith.constant 0 : index
    %c0_1 = arith.constant 0 : index
    %c0_2 = arith.constant 0 : index
    %c0_3 = arith.constant 0 : index
    %9 = vector.load %arg3[%c0_0, %c0_1, %c0_2, %c0_3] : memref<1x6x1x128xf32, #tpu.memory_space<vmem>>, vector<1x1x1x128xf32>
    %10 = vector.shape_cast %9 : vector<1x1x1x128xf32> to vector<1x128xf32>
    %cst_4 = arith.constant 1.000000e+00 : f32
    %11 = vector.broadcast %cst_4 : f32 to vector<1x128xf32>
    %12 = arith.cmpf oeq, %10, %11 : vector<1x128xf32>
    %cst_5 = arith.constant 0.000000e+00 : f32
    %13 = vector.broadcast %cst_5 : f32 to vector<1x128xf32>
    %14 = arith.cmpf oeq, %10, %13 : vector<1x128xf32>
    %c0_6 = arith.constant 0 : index
    %c0_7 = arith.constant 0 : index
    %c0_8 = arith.constant 0 : index
    %c0_9 = arith.constant 0 : index
    %15 = vector.load %arg2[%c0_6, %c0_7, %c0_8, %c0_9] : memref<1x9x1x128xf32, #tpu.memory_space<vmem>>, vector<1x1x1x128xf32>
    %16 = vector.shape_cast %15 : vector<1x1x1x128xf32> to vector<1x128xf32>
    %cst_10 = arith.constant 0.000000e+00 : f32
    %17 = vector.broadcast %cst_10 : f32 to vector<1x128xf32>
    %18 = arith.maximumf %16, %17 : vector<1x128xf32>
    %19 = math.absf %16 : vector<1x128xf32>
    %cst_11 = arith.constant 0.000000e+00 : f32
    %20 = vector.broadcast %cst_11 : f32 to vector<1x128xf32>
    %21 = arith.subf %20, %19 : vector<1x128xf32>
    %22 = math.exp %21 : vector<1x128xf32>
    %23 = math.log1p %22 : vector<1x128xf32>
    %24 = arith.addf %18, %23 : vector<1x128xf32>
    %cst_12 = arith.constant 0.000000e+00 : f32
    %25 = vector.broadcast %cst_12 : f32 to vector<1x128xf32>
    %26 = arith.select %14, %24, %25 : vector<1x128xi1>, vector<1x128xf32>
    %c0_13 = arith.constant 0 : index
    %c1_14 = arith.constant 1 : index
    %c0_15 = arith.constant 0 : index
    %c0_16 = arith.constant 0 : index
    %27 = vector.load %arg2[%c0_13, %c1_14, %c0_15, %c0_16] : memref<1x9x1x128xf32, #tpu.memory_space<vmem>>, vector<1x1x1x128xf32>
    %28 = vector.shape_cast %27 : vector<1x1x1x128xf32> to vector<1x128xf32>
    %c0_17 = arith.constant 0 : index
    %c2_18 = arith.constant 2 : index
    %c0_19 = arith.constant 0 : index
    %c0_20 = arith.constant 0 : index
    %29 = vector.load %arg2[%c0_17, %c2_18, %c0_19, %c0_20] : memref<1x9x1x128xf32, #tpu.memory_space<vmem>>, vector<1x1x1x128xf32>
    %30 = vector.shape_cast %29 : vector<1x1x1x128xf32> to vector<1x128xf32>
    %c0_21 = arith.constant 0 : index
    %c3_22 = arith.constant 3 : index
    %c0_23 = arith.constant 0 : index
    %c0_24 = arith.constant 0 : index
    %31 = vector.load %arg2[%c0_21, %c3_22, %c0_23, %c0_24] : memref<1x9x1x128xf32, #tpu.memory_space<vmem>>, vector<1x1x1x128xf32>
    %32 = vector.shape_cast %31 : vector<1x1x1x128xf32> to vector<1x128xf32>
    %c0_25 = arith.constant 0 : index
    %c4 = arith.constant 4 : index
    %c0_26 = arith.constant 0 : index
    %c0_27 = arith.constant 0 : index
    %33 = vector.load %arg2[%c0_25, %c4, %c0_26, %c0_27] : memref<1x9x1x128xf32, #tpu.memory_space<vmem>>, vector<1x1x1x128xf32>
    %34 = vector.shape_cast %33 : vector<1x1x1x128xf32> to vector<1x128xf32>
    %cst_28 = arith.constant 0.000000e+00 : f32
    %35 = vector.broadcast %cst_28 : f32 to vector<1x128xf32>
    %36 = arith.subf %35, %28 : vector<1x128xf32>
    %37 = math.exp %36 : vector<1x128xf32>
    %cst_29 = arith.constant 1.000000e+00 : f32
    %38 = vector.broadcast %cst_29 : f32 to vector<1x128xf32>
    %39 = arith.addf %38, %37 : vector<1x128xf32>
    %40 = tpu.reciprocal %39 {approx = true} : vector<1x128xf32> -> vector<1x128xf32>
    %cst_30 = arith.constant 0.000000e+00 : f32
    %41 = vector.broadcast %cst_30 : f32 to vector<1x128xf32>
    %42 = arith.subf %41, %30 : vector<1x128xf32>
    %43 = math.exp %42 : vector<1x128xf32>
    %cst_31 = arith.constant 1.000000e+00 : f32
    %44 = vector.broadcast %cst_31 : f32 to vector<1x128xf32>
    %45 = arith.addf %44, %43 : vector<1x128xf32>
    %46 = tpu.reciprocal %45 {approx = true} : vector<1x128xf32> -> vector<1x128xf32>
    %47 = math.exp %32 : vector<1x128xf32>
    %48 = vector.broadcast %1 : f32 to vector<1x128xf32>
    %49 = arith.mulf %47, %48 : vector<1x128xf32>
    %50 = math.exp %34 : vector<1x128xf32>
    %51 = vector.broadcast %3 : f32 to vector<1x128xf32>
    %52 = arith.mulf %50, %51 : vector<1x128xf32>
    %c0_32 = arith.constant 0 : index
    %c1_33 = arith.constant 1 : index
    %c0_34 = arith.constant 0 : index
    %c0_35 = arith.constant 0 : index
    %53 = vector.load %arg3[%c0_32, %c1_33, %c0_34, %c0_35] : memref<1x6x1x128xf32, #tpu.memory_space<vmem>>, vector<1x1x1x128xf32>
    %54 = vector.shape_cast %53 : vector<1x1x1x128xf32> to vector<1x128xf32>
    %c0_36 = arith.constant 0 : index
    %c2_37 = arith.constant 2 : index
    %c0_38 = arith.constant 0 : index
    %c0_39 = arith.constant 0 : index
    %55 = vector.load %arg3[%c0_36, %c2_37, %c0_38, %c0_39] : memref<1x6x1x128xf32, #tpu.memory_space<vmem>>, vector<1x1x1x128xf32>
    %56 = vector.shape_cast %55 : vector<1x1x1x128xf32> to vector<1x128xf32>
    %c0_40 = arith.constant 0 : index
    %c3_41 = arith.constant 3 : index
    %c0_42 = arith.constant 0 : index
    %c0_43 = arith.constant 0 : index
    %57 = vector.load %arg3[%c0_40, %c3_41, %c0_42, %c0_43] : memref<1x6x1x128xf32, #tpu.memory_space<vmem>>, vector<1x1x1x128xf32>
    %58 = vector.shape_cast %57 : vector<1x1x1x128xf32> to vector<1x128xf32>
    %c0_44 = arith.constant 0 : index
    %c4_45 = arith.constant 4 : index
    %c0_46 = arith.constant 0 : index
    %c0_47 = arith.constant 0 : index
    %59 = vector.load %arg3[%c0_44, %c4_45, %c0_46, %c0_47] : memref<1x6x1x128xf32, #tpu.memory_space<vmem>>, vector<1x1x1x128xf32>
    %60 = vector.shape_cast %59 : vector<1x1x1x128xf32> to vector<1x128xf32>
    %cst_48 = arith.constant 5.000000e-01 : f32
    %61 = vector.broadcast %cst_48 : f32 to vector<1x128xf32>
    %62 = arith.mulf %61, %49 : vector<1x128xf32>
    %63 = arith.addf %40, %62 : vector<1x128xf32>
    %cst_49 = arith.constant 5.000000e-01 : f32
    %64 = vector.broadcast %cst_49 : f32 to vector<1x128xf32>
    %65 = arith.mulf %64, %58 : vector<1x128xf32>
    %66 = arith.addf %54, %65 : vector<1x128xf32>
    %67 = arith.minimumf %63, %66 : vector<1x128xf32>
    %cst_50 = arith.constant 5.000000e-01 : f32
    %68 = vector.broadcast %cst_50 : f32 to vector<1x128xf32>
    %69 = arith.mulf %68, %49 : vector<1x128xf32>
    %70 = arith.subf %40, %69 : vector<1x128xf32>
    %cst_51 = arith.constant 5.000000e-01 : f32
    %71 = vector.broadcast %cst_51 : f32 to vector<1x128xf32>
    %72 = arith.mulf %71, %58 : vector<1x128xf32>
    %73 = arith.subf %54, %72 : vector<1x128xf32>
    %74 = arith.maximumf %70, %73 : vector<1x128xf32>
    %75 = arith.subf %67, %74 : vector<1x128xf32>
    %cst_52 = arith.constant 0.000000e+00 : f32
    %76 = vector.broadcast %cst_52 : f32 to vector<1x128xf32>
    %77 = arith.maximumf %75, %76 : vector<1x128xf32>
    %cst_53 = arith.constant 5.000000e-01 : f32
    %78 = vector.broadcast %cst_53 : f32 to vector<1x128xf32>
    %79 = arith.mulf %78, %52 : vector<1x128xf32>
    %80 = arith.addf %46, %79 : vector<1x128xf32>
    %cst_54 = arith.constant 5.000000e-01 : f32
    %81 = vector.broadcast %cst_54 : f32 to vector<1x128xf32>
    %82 = arith.mulf %81, %60 : vector<1x128xf32>
    %83 = arith.addf %56, %82 : vector<1x128xf32>
    %84 = arith.minimumf %80, %83 : vector<1x128xf32>
    %cst_55 = arith.constant 5.000000e-01 : f32
    %85 = vector.broadcast %cst_55 : f32 to vector<1x128xf32>
    %86 = arith.mulf %85, %52 : vector<1x128xf32>
    %87 = arith.subf %46, %86 : vector<1x128xf32>
    %cst_56 = arith.constant 5.000000e-01 : f32
    %88 = vector.broadcast %cst_56 : f32 to vector<1x128xf32>
    %89 = arith.mulf %88, %60 : vector<1x128xf32>
    %90 = arith.subf %56, %89 : vector<1x128xf32>
    %91 = arith.maximumf %87, %90 : vector<1x128xf32>
    %92 = arith.subf %84, %91 : vector<1x128xf32>
    %cst_57 = arith.constant 0.000000e+00 : f32
    %93 = vector.broadcast %cst_57 : f32 to vector<1x128xf32>
    %94 = arith.maximumf %92, %93 : vector<1x128xf32>
    %95 = arith.mulf %77, %94 : vector<1x128xf32>
    %96 = arith.mulf %49, %52 : vector<1x128xf32>
    %97 = math.absf %96 : vector<1x128xf32>
    %98 = arith.mulf %58, %60 : vector<1x128xf32>
    %99 = math.absf %98 : vector<1x128xf32>
    %100 = arith.addf %97, %99 : vector<1x128xf32>
    %101 = arith.subf %100, %95 : vector<1x128xf32>
    %cst_58 = arith.constant 9.99999997E-7 : f32
    %102 = vector.broadcast %cst_58 : f32 to vector<1x128xf32>
    %103 = arith.addf %101, %102 : vector<1x128xf32>
    %104 = tpu.reciprocal %103 {approx = true} : vector<1x128xf32> -> vector<1x128xf32>
    %105 = arith.mulf %95, %104 : vector<1x128xf32>
    %106 = arith.mulf %16, %105 : vector<1x128xf32>
    %107 = arith.subf %24, %106 : vector<1x128xf32>
    %cst_59 = arith.constant 0.000000e+00 : f32
    %108 = vector.broadcast %cst_59 : f32 to vector<1x128xf32>
    %109 = arith.select %12, %107, %108 : vector<1x128xi1>, vector<1x128xf32>
    %110 = vector.broadcast %1 : f32 to vector<1x128xf32>
    %111 = arith.select %12, %58, %110 : vector<1x128xi1>, vector<1x128xf32>
    %112 = vector.broadcast %5 : f32 to vector<1x128xf32>
    %113 = arith.mulf %111, %112 : vector<1x128xf32>
    %cst_60 = arith.constant 9.99999997E-7 : f32
    %114 = vector.broadcast %cst_60 : f32 to vector<1x128xf32>
    %115 = arith.addf %114, %113 : vector<1x128xf32>
    %116 = math.log %115 : vector<1x128xf32>
    %117 = vector.broadcast %3 : f32 to vector<1x128xf32>
    %118 = arith.select %12, %60, %117 : vector<1x128xi1>, vector<1x128xf32>
    %119 = vector.broadcast %7 : f32 to vector<1x128xf32>
    %120 = arith.mulf %118, %119 : vector<1x128xf32>
    %cst_61 = arith.constant 9.99999997E-7 : f32
    %121 = vector.broadcast %cst_61 : f32 to vector<1x128xf32>
    %122 = arith.addf %121, %120 : vector<1x128xf32>
    %123 = math.log %122 : vector<1x128xf32>
    %124 = arith.subf %40, %54 : vector<1x128xf32>
    %125 = arith.mulf %124, %124 : vector<1x128xf32>
    %126 = arith.subf %46, %56 : vector<1x128xf32>
    %127 = arith.mulf %126, %126 : vector<1x128xf32>
    %128 = arith.addf %125, %127 : vector<1x128xf32>
    %129 = arith.subf %32, %116 : vector<1x128xf32>
    %130 = arith.mulf %129, %129 : vector<1x128xf32>
    %131 = arith.addf %128, %130 : vector<1x128xf32>
    %132 = arith.subf %34, %123 : vector<1x128xf32>
    %133 = arith.mulf %132, %132 : vector<1x128xf32>
    %134 = arith.addf %131, %133 : vector<1x128xf32>
    %cst_62 = arith.constant 0.000000e+00 : f32
    %135 = vector.broadcast %cst_62 : f32 to vector<1x128xf32>
    %136 = arith.select %12, %134, %135 : vector<1x128xi1>, vector<1x128xf32>
    %c0_63 = arith.constant 0 : index
    %c5 = arith.constant 5 : index
    %c0_64 = arith.constant 0 : index
    %c0_65 = arith.constant 0 : index
    %137 = vector.load %arg3[%c0_63, %c5, %c0_64, %c0_65] : memref<1x6x1x128xf32, #tpu.memory_space<vmem>>, vector<1x1x1x128xf32>
    %138 = vector.shape_cast %137 : vector<1x1x1x128xf32> to vector<1x128xf32>
    %c0_66 = arith.constant 0 : index
    %c5_67 = arith.constant 5 : index
    %c0_68 = arith.constant 0 : index
    %c0_69 = arith.constant 0 : index
    %139 = vector.load %arg2[%c0_66, %c5_67, %c0_68, %c0_69] : memref<1x9x1x128xf32, #tpu.memory_space<vmem>>, vector<1x1x1x128xf32>
    %140 = vector.shape_cast %139 : vector<1x1x1x128xf32> to vector<1x128xf32>
    %c0_70 = arith.constant 0 : index
    %c6 = arith.constant 6 : index
    %c0_71 = arith.constant 0 : index
    %c0_72 = arith.constant 0 : index
    %141 = vector.load %arg2[%c0_70, %c6, %c0_71, %c0_72] : memref<1x9x1x128xf32, #tpu.memory_space<vmem>>, vector<1x1x1x128xf32>
    %142 = vector.shape_cast %141 : vector<1x1x1x128xf32> to vector<1x128xf32>
    %c0_73 = arith.constant 0 : index
    %c7 = arith.constant 7 : index
    %c0_74 = arith.constant 0 : index
    %c0_75 = arith.constant 0 : index
    %143 = vector.load %arg2[%c0_73, %c7, %c0_74, %c0_75] : memref<1x9x1x128xf32, #tpu.memory_space<vmem>>, vector<1x1x1x128xf32>
    %144 = vector.shape_cast %143 : vector<1x1x1x128xf32> to vector<1x128xf32>
    %c0_76 = arith.constant 0 : index
    %c8 = arith.constant 8 : index
    %c0_77 = arith.constant 0 : index
    %c0_78 = arith.constant 0 : index
    %145 = vector.load %arg2[%c0_76, %c8, %c0_77, %c0_78] : memref<1x9x1x128xf32, #tpu.memory_space<vmem>>, vector<1x1x1x128xf32>
    %146 = vector.shape_cast %145 : vector<1x1x1x128xf32> to vector<1x128xf32>
    %147 = arith.maximumf %140, %142 : vector<1x128xf32>
    %148 = arith.maximumf %147, %144 : vector<1x128xf32>
    %149 = arith.maximumf %148, %146 : vector<1x128xf32>
    %cst_79 = arith.constant 0.000000e+00 : f32
    %150 = vector.broadcast %cst_79 : f32 to vector<1x128xf32>
    %cst_80 = arith.constant 0.000000e+00 : f32
    %151 = vector.broadcast %cst_80 : f32 to vector<1x128xf32>
    %152 = arith.subf %140, %149 : vector<1x128xf32>
    %153 = math.exp %152 : vector<1x128xf32>
    %154 = arith.addf %150, %153 : vector<1x128xf32>
    %cst_81 = arith.constant 0.000000e+00 : f32
    %155 = vector.broadcast %cst_81 : f32 to vector<1x128xf32>
    %156 = arith.cmpf oeq, %138, %155 : vector<1x128xf32>
    %cst_82 = arith.constant 0.000000e+00 : f32
    %157 = vector.broadcast %cst_82 : f32 to vector<1x128xf32>
    %158 = arith.select %156, %140, %157 : vector<1x128xi1>, vector<1x128xf32>
    %159 = arith.addf %151, %158 : vector<1x128xf32>
    %160 = arith.subf %142, %149 : vector<1x128xf32>
    %161 = math.exp %160 : vector<1x128xf32>
    %162 = arith.addf %154, %161 : vector<1x128xf32>
    %cst_83 = arith.constant 1.000000e+00 : f32
    %163 = vector.broadcast %cst_83 : f32 to vector<1x128xf32>
    %164 = arith.cmpf oeq, %138, %163 : vector<1x128xf32>
    %cst_84 = arith.constant 0.000000e+00 : f32
    %165 = vector.broadcast %cst_84 : f32 to vector<1x128xf32>
    %166 = arith.select %164, %142, %165 : vector<1x128xi1>, vector<1x128xf32>
    %167 = arith.addf %159, %166 : vector<1x128xf32>
    %168 = arith.subf %144, %149 : vector<1x128xf32>
    %169 = math.exp %168 : vector<1x128xf32>
    %170 = arith.addf %162, %169 : vector<1x128xf32>
    %cst_85 = arith.constant 2.000000e+00 : f32
    %171 = vector.broadcast %cst_85 : f32 to vector<1x128xf32>
    %172 = arith.cmpf oeq, %138, %171 : vector<1x128xf32>
    %cst_86 = arith.constant 0.000000e+00 : f32
    %173 = vector.broadcast %cst_86 : f32 to vector<1x128xf32>
    %174 = arith.select %172, %144, %173 : vector<1x128xi1>, vector<1x128xf32>
    %175 = arith.addf %167, %174 : vector<1x128xf32>
    %176 = arith.subf %146, %149 : vector<1x128xf32>
    %177 = math.exp %176 : vector<1x128xf32>
    %178 = arith.addf %170, %177 : vector<1x128xf32>
    %cst_87 = arith.constant 3.000000e+00 : f32
    %179 = vector.broadcast %cst_87 : f32 to vector<1x128xf32>
    %180 = arith.cmpf oeq, %138, %179 : vector<1x128xf32>
    %cst_88 = arith.constant 0.000000e+00 : f32
    %181 = vector.broadcast %cst_88 : f32 to vector<1x128xf32>
    %182 = arith.select %180, %146, %181 : vector<1x128xi1>, vector<1x128xf32>
    %183 = arith.addf %175, %182 : vector<1x128xf32>
    %184 = math.log %178 : vector<1x128xf32>
    %185 = arith.addf %149, %184 : vector<1x128xf32>
    %186 = arith.subf %185, %183 : vector<1x128xf32>
    %cst_89 = arith.constant 0.000000e+00 : f32
    %187 = vector.broadcast %cst_89 : f32 to vector<1x128xf32>
    %188 = arith.select %12, %186, %187 : vector<1x128xi1>, vector<1x128xf32>
    %189 = arith.extui %14 : vector<1x128xi1> to vector<1x128xi32>
    %190 = arith.sitofp %189 : vector<1x128xi32> to vector<1x128xf32>
    %191 = arith.addf %8, %190 : vector<1x128xf32>
    %192 = arith.addf %8, %26 : vector<1x128xf32>
    %193 = arith.extui %12 : vector<1x128xi1> to vector<1x128xi32>
    %194 = arith.sitofp %193 : vector<1x128xi32> to vector<1x128xf32>
    %195 = arith.addf %8, %194 : vector<1x128xf32>
    %196 = arith.addf %8, %109 : vector<1x128xf32>
    %197 = arith.addf %8, %136 : vector<1x128xf32>
    %198 = arith.addf %8, %188 : vector<1x128xf32>
    %cst_90 = arith.constant dense<0.000000e+00> : vector<128xf32>
    %199 = vector.multi_reduction <add>, %191, %cst_90 [0] : vector<1x128xf32> to vector<128xf32>
    %200 = vector.shape_cast %199 : vector<128xf32> to vector<1x128xf32>
    %cst_91 = arith.constant dense<0.000000e+00> : vector<128xf32>
    %201 = vector.multi_reduction <add>, %192, %cst_91 [0] : vector<1x128xf32> to vector<128xf32>
    %202 = vector.shape_cast %201 : vector<128xf32> to vector<1x128xf32>
    %cst_92 = arith.constant dense<0.000000e+00> : vector<128xf32>
    %203 = vector.multi_reduction <add>, %195, %cst_92 [0] : vector<1x128xf32> to vector<128xf32>
    %204 = vector.shape_cast %203 : vector<128xf32> to vector<1x128xf32>
    %cst_93 = arith.constant dense<0.000000e+00> : vector<128xf32>
    %205 = vector.multi_reduction <add>, %196, %cst_93 [0] : vector<1x128xf32> to vector<128xf32>
    %206 = vector.shape_cast %205 : vector<128xf32> to vector<1x128xf32>
    %cst_94 = arith.constant dense<0.000000e+00> : vector<128xf32>
    %207 = vector.multi_reduction <add>, %197, %cst_94 [0] : vector<1x128xf32> to vector<128xf32>
    %208 = vector.shape_cast %207 : vector<128xf32> to vector<1x128xf32>
    %cst_95 = arith.constant dense<0.000000e+00> : vector<128xf32>
    %209 = vector.multi_reduction <add>, %198, %cst_95 [0] : vector<1x128xf32> to vector<128xf32>
    %210 = vector.shape_cast %209 : vector<128xf32> to vector<1x128xf32>
    %cst_96 = arith.constant 0.000000e+00 : f32
    %211 = vector.broadcast %cst_96 : f32 to vector<2x128xf32>
    %212 = tpu.concatenate %200, %202, %204, %206, %208, %210, %211 in 0 : vector<1x128xf32>, vector<1x128xf32>, vector<1x128xf32>, vector<1x128xf32>, vector<1x128xf32>, vector<1x128xf32>, vector<2x128xf32> -> vector<8x128xf32>
    %c0_97 = arith.constant 0 : index
    %c0_98 = arith.constant 0 : index
    %c0_99 = arith.constant 0 : index
    %c0_100 = arith.constant 0 : index
    %213 = vector.load %arg5[%c0_97, %c0_98, %c0_99, %c0_100] : memref<1x1x8x128xf32, #tpu.memory_space<vmem>>, vector<1x1x8x128xf32>
    %214 = vector.shape_cast %213 : vector<1x1x8x128xf32> to vector<8x128xf32>
    %215 = vector.shape_cast %212 : vector<8x128xf32> to vector<1x1x8x128xf32>
    tpu.vector_store %arg5[%c0_97, %c0_98, %c0_99, %c0_100], %215 {strides = array<i32>} : memref<1x1x8x128xf32, #tpu.memory_space<vmem>>, vector<1x1x8x128xf32>,
    return
  }
  func.func @transform_0(%arg0: i32, %arg1: i32) -> (i32, i32, i32, i32) {
    %c0_i32 = arith.constant 0 : i32
    %c0_i32_0 = arith.constant 0 : i32
    %c0_i32_1 = arith.constant 0 : i32
    return %arg0, %c0_i32, %arg1, %c0_i32_0 : i32, i32, i32, i32
  }
  func.func @transform_1(%arg0: i32, %arg1: i32) -> (i32, i32, i32, i32) {
    %c0_i32 = arith.constant 0 : i32
    %c0_i32_0 = arith.constant 0 : i32
    %c0_i32_1 = arith.constant 0 : i32
    return %arg0, %c0_i32, %arg1, %c0_i32_0 : i32, i32, i32, i32
  }
  func.func @transform_2(%arg0: i32, %arg1: i32) -> (i32, i32) {
    %c0_i32 = arith.constant 0 : i32
    %c0_i32_0 = arith.constant 0 : i32
    %c0_i32_1 = arith.constant 0 : i32
    return %c0_i32, %c0_i32_0 : i32, i32
  }
  func.func @transform_3(%arg0: i32, %arg1: i32) -> (i32, i32, i32, i32) {
    %c0_i32 = arith.constant 0 : i32
    %c0_i32_0 = arith.constant 0 : i32
    %c0_i32_1 = arith.constant 0 : i32
    return %arg0, %arg1, %c0_i32, %c0_i32_0 : i32, i32, i32, i32
  }
}

</mosaic_0001>

<llo_original>
// kernel: yolo_loss.1
$region0: #{yolo_loss.1}
  #allocation0 [shape = 'u32[]', space=smem, size = 0x4, offset = 0x4, fixed_abs, tag = 'smem constant byte address 0x4 - core index']
  #allocation1 [shape = 'u32[144,128]{1,0:T(1,128)}', space=vmem, size = 0x12000, scoped, tag = 'internal scratch']
  %s0 = inlined_call_operand.vmem [shape: f32[3,9,1,128], index: 0, kind: input, shape index: {}]
  %s1 = inlined_call_operand.vmem [shape: f32[3,6,1,128], index: 1, kind: input, shape index: {}]
  %s2 = inlined_call_operand.vmem [shape: f32[3,4], index: 2, kind: input, shape index: {}]
  %s3 = inlined_call_operand.vmem [shape: f32[3,1,8,128], index: 3, kind: output, shape index: {}]
  %s4 = sld [smem:[#allocation0]]
  $region49: #{yolo_loss.1} parent=0
    _
  %s6 = ssub.s32 1, %s4
  %s7 = scalar_select 0, %s6, %s4
  $region1: #{yolo_loss.1} parent=0
    #allocation2 [shape = 'u8[2048]{0}', space=smem, size = 0x800, scoped, tag = 'input window, operand 2, single buffered']
    #allocation3 [shape = 's32[2]{0}', space=sflag, size = 0x8, scoped, tag = 'scoped memory for yolo_loss.1']
    %8 = vsyncpa [#allocation3], 0
    loop: start=0, step=1, limit=5
    $region2: #{yolo_loss.1} parent=1 // loop_pre_header
      _
    $region3: #{yolo_loss.1} parent=1 // loop_header
      %s10 = sphi 0, %s14
      %p11 = scmp.ge.s32.totalorder %s10, 5
      %s17 = sphi 0, %s29
      %s18 = sphi 0, %s25
      %s19 = sphi 0, %s17
      %s20 = sphi 0, %s18
      %s21 = sphi 0, %s19
      %s22 = sphi 0, %s20
      %s34 = sphi 0, %s36
      %s37 = sphi 0, %s34
      %s38 = sphi 0, %s37
      %s54 = sphi 0, %s38
      %s62 = sphi 0, %s64
      %s65 = sphi 0, %s62
      %s66 = sphi 0, %s65
      %s82 = sphi 0, %s66
      %s86 = sphi 0, %s86
      %s88 = sphi 0, %s86
      %s89 = sphi 0, %s88
      %s103 = sphi 0, %s89
      %s111 = sphi 0, %s113
      %s114 = sphi 0, %s111
      %s115 = sphi 0, %s114
      %s131 = sphi 0, %s115
    $region4: #{yolo_loss.1} parent=1 // loop_header_branch
      %13 = sbr.rel (%p11) target = $region8
    $region5: #{yolo_loss.1} parent=1 // loop_body
      %s15 = ssub.s32 %s10, 1
      %s16 = ssub.s32 %s10, 2
      %s23 = sadd.s32 1, %s18
      %p24 = scmp.ge.s32.totalorder %s23, 1
      %s25 = scalar_select %p24, 0, %s23
      %s26 = sadd.s32 1, %s17
      %s27 = scalar_select %p24, %s26, %s17
      %p28 = scmp.ge.s32.totalorder %s27, 3
      %s29 = scalar_select %p28, 0, %s27
      %s30 = ssub.s32 %s17, %s29
      %s31 = ssub.s32 %s18, %s25
      %s32 = sor.u32 %s30, %s31
      %p33 = scmp.eq.s32.totalorder %s32, 0
      %s35 = sadd.s32 %s34, 1
      %s36 = scalar_select %p33, %s34, %s35
      %p39 = pneg %p33
      %p40 = scmp.eq.s32.totalorder %s10, 2
      %p41 = por %p39, %p40
      %p42 = scmp.ne.s32.totalorder %s34, %s37
      %p43 = scmp.eq.s32.totalorder %s10, 0
      %p44 = por %p42, %p43
      %p45 = scmp.ne.s32.totalorder %s34, %s37
      %p46 = scmp.eq.s32.totalorder %s15, 2
      %p47 = por %p45, %p46
      %p48 = scmp.ne.s32.totalorder %s37, %s38
      %p49 = scmp.eq.s32.totalorder %s15, 0
      %p50 = por %p48, %p49
      %p51 = scmp.ne.s32.totalorder %s37, %s38
      %p52 = scmp.eq.s32.totalorder %s16, 2
      %p53 = por %p51, %p52
      %p55 = scmp.ne.s32.totalorder %s38, %s54
      %p56 = scmp.eq.s32.totalorder %s16, 0
      %p57 = por %p55, %p56
      %s58 = ssub.s32 %s17, %s29
      %s59 = ssub.s32 %s18, %s25
      %s60 = sor.u32 %s58, %s59
      %p61 = scmp.eq.s32.totalorder %s60, 0
      %s63 = sadd.s32 %s62, 1
      %s64 = scalar_select %p61, %s62, %s63
      %p67 = pneg %p61
      %p68 = scmp.eq.s32.totalorder %s10, 2
      %p69 = por %p67, %p68
      %p70 = scmp.ne.s32.totalorder %s62, %s65
      %p71 = scmp.eq.s32.totalorder %s10, 0
      %p72 = por %p70, %p71
      %p73 = scmp.ne.s32.totalorder %s62, %s65
      %p74 = scmp.eq.s32.totalorder %s15, 2
      %p75 = por %p73, %p74
      %p76 = scmp.ne.s32.totalorder %s65, %s66
      %p77 = scmp.eq.s32.totalorder %s15, 0
      %p78 = por %p76, %p77
      %p79 = scmp.ne.s32.totalorder %s65, %s66
      %p80 = scmp.eq.s32.totalorder %s16, 2
      %p81 = por %p79, %p80
      %p83 = scmp.ne.s32.totalorder %s66, %s82
      %p84 = scmp.eq.s32.totalorder %s16, 0
      %p85 = por %p83, %p84
      %s87 = sadd.s32 %s86, 1
      %p90 = scmp.eq.s32.totalorder %s10, 2
      %p91 = scmp.ne.s32.totalorder %s86, %s88
      %p92 = scmp.eq.s32.totalorder %s10, 0
      %p93 = por %p91, %p92
      %p94 = scmp.ne.s32.totalorder %s86, %s88
      %p95 = scmp.eq.s32.totalorder %s15, 2
      %p96 = por %p94, %p95
      %p97 = scmp.ne.s32.totalorder %s88, %s89
      %p98 = scmp.eq.s32.totalorder %s15, 0
      %p99 = por %p97, %p98
      %p100 = scmp.ne.s32.totalorder %s88, %s89
      %p101 = scmp.eq.s32.totalorder %s16, 2
      %p102 = por %p100, %p101
      %p104 = scmp.ne.s32.totalorder %s89, %s103
      %p105 = scmp.eq.s32.totalorder %s16, 0
      %p106 = por %p104, %p105
      %s107 = ssub.s32 %s17, %s29
      %s108 = ssub.s32 %s18, %s25
      %s109 = sor.u32 %s107, %s108
      %p110 = scmp.eq.s32.totalorder %s109, 0
      %s112 = sadd.s32 %s111, 1
      %s113 = scalar_select %p110, %s111, %s112
      %p116 = pneg %p110
      %p117 = scmp.eq.s32.totalorder %s10, 2
      %p118 = por %p116, %p117
      %p119 = scmp.ne.s32.totalorder %s111, %s114
      %p120 = scmp.eq.s32.totalorder %s10, 0
      %p121 = por %p119, %p120
      %p122 = scmp.ne.s32.totalorder %s111, %s114
      %p123 = scmp.eq.s32.totalorder %s15, 2
      %p124 = por %p122, %p123
      %p125 = scmp.ne.s32.totalorder %s114, %s115
      %p126 = scmp.eq.s32.totalorder %s15, 0
      %p127 = por %p125, %p126
      %p128 = scmp.ne.s32.totalorder %s114, %s115
      %p129 = scmp.eq.s32.totalorder %s16, 2
      %p130 = por %p128, %p129
      %p132 = scmp.ne.s32.totalorder %s115, %s131
      %p133 = scmp.eq.s32.totalorder %s16, 0
      %p134 = por %p132, %p133
      %p135 = scmp.le.s32.totalorder 1, %s10
      %p136 = scmp.lt.s32.totalorder %s10, 4
      %p137 = pnand %p135, %p136
      %p138 = pneg %p137
      // Predicated region
      $region9: #{yolo_loss.1} parent=5 // pred_check
        _
      $region10: #{yolo_loss.1} parent=5 // pred_check_branch
        %140 = sbr.rel (%p137) target = $region12
      $region11: #{yolo_loss.1} parent=5 // pred_region
        %s141 = ssub.s32 %s10, 1
        // Predicated region
        $region13: #{yolo_loss.1} parent=11 // pred_check
          %p142 = pneg %p99
        $region14: #{yolo_loss.1} parent=11 // pred_check_branch
          %144 = sbr.rel (%p142) target = $region16
        $region15: #{yolo_loss.1} parent=11 // pred_region
          %s146 = ssub.s32 64, 64
          %147 = vsyncadd [#allocation3], %s146
          %s149 = sshll.u32 %s2, 4
          %s150 = int_to_ptr.vmem [resolvable:$true] %s149
          %152 = dma.vmem_to_smem %s150, 64, [#allocation2], [#allocation3]
        $region16: #{yolo_loss.1} parent=11 // pred_fallthru
          _
      $region12: #{yolo_loss.1} parent=5 // pred_fallthru
        _
      %p153 = scmp.lt.s32.totalorder %s10, 3
      // Predicated region
      $region17: #{yolo_loss.1} parent=5 // pred_check
        %p154 = pneg %p153
      $region18: #{yolo_loss.1} parent=5 // pred_check_branch
        %156 = sbr.rel (%p154) target = $region20
      $region19: #{yolo_loss.1} parent=5 // pred_region
        // Predicated region
        $region21: #{yolo_loss.1} parent=19 // pred_check
          %p157 = pneg %p44
        $region22: #{yolo_loss.1} parent=19 // pred_check_branch
          %159 = sbr.rel (%p157) target = $region24
        $region23: #{yolo_loss.1} parent=19 // pred_region
          %p160 = scmp.lt.s32.totalorder %s17, 2
          %s161 = scalar_select %p160, %s17, 2
          %p162 = scmp.lt.s32.totalorder %s18, 0
          %s163 = scalar_select %p162, %s18, 0
          %s164 = smul.addr %s161, 9
          %s165 = sadd.s32 %s163, %s164
          %s166 = scalar_lea.vmem %s0, %s165
        $region24: #{yolo_loss.1} parent=19 // pred_fallthru
          _
        // Predicated region
        $region25: #{yolo_loss.1} parent=19 // pred_check
          %p167 = pneg %p72
        $region26: #{yolo_loss.1} parent=19 // pred_check_branch
          %169 = sbr.rel (%p167) target = $region28
        $region27: #{yolo_loss.1} parent=19 // pred_region
          %p170 = scmp.lt.s32.totalorder %s17, 2
          %s171 = scalar_select %p170, %s17, 2
          %p172 = scmp.lt.s32.totalorder %s18, 0
          %s173 = scalar_select %p172, %s18, 0
          %s174 = smul.addr %s171, 6
          %s175 = sadd.s32 %s173, %s174
          %s176 = scalar_lea.vmem %s1, %s175
        $region28: #{yolo_loss.1} parent=19 // pred_fallthru
          _
      $region20: #{yolo_loss.1} parent=5 // pred_fallthru
        _
      %p177 = scmp.le.s32.totalorder 1, %s10
      %p178 = scmp.lt.s32.totalorder %s10, 4
      %p179 = pnand %p177, %p178
      %p180 = pneg %p179
      // Predicated region
      $region29: #{yolo_loss.1} parent=5 // pred_check
        _
      $region30: #{yolo_loss.1} parent=5 // pred_check_branch
        %182 = sbr.rel (%p179) target = $region32
      $region31: #{yolo_loss.1} parent=5 // pred_region
        %s183 = ssub.s32 %s10, 1
        // Predicated region
        $region33: #{yolo_loss.1} parent=31 // pred_check
          %p184 = pneg %p99
        $region34: #{yolo_loss.1} parent=31 // pred_check_branch
          %186 = sbr.rel (%p184) target = $region36
        $region35: #{yolo_loss.1} parent=31 // pred_region
          %187 = dma.done [#allocation3], 64
        $region36: #{yolo_loss.1} parent=31 // pred_fallthru
          _
        %188 = sfence
        %p189 = scmp.lt.s32.totalorder %s19, 2
        %s190 = scalar_select %p189, %s19, 2
        %p191 = scmp.lt.s32.totalorder %s20, 0
        %s192 = scalar_select %p191, %s20, 0
        %s193 = smul.addr %s190, 9
        %s194 = sadd.s32 %s192, %s193
        %s195 = scalar_lea.vmem %s0, %s194
        %p196 = pneg %p50
        %p197 = pneg %p47
        %p198 = scmp.lt.s32.totalorder %s19, 2
        %s199 = scalar_select %p198, %s19, 2
        %p200 = scmp.lt.s32.totalorder %s20, 0
        %s201 = scalar_select %p200, %s20, 0
        %s202 = smul.addr %s199, 6
        %s203 = sadd.s32 %s201, %s202
        %s204 = scalar_lea.vmem %s1, %s203
        %p205 = pneg %p78
        %p206 = pneg %p75
        %p207 = pneg %p99
        %p208 = pneg %p96
        %p209 = pneg %p127
        %p210 = pneg %p124
        %p211 = scmp.lt.s32.totalorder %s19, 2
        %s212 = scalar_select %p211, %s19, 2
        %p213 = scmp.lt.s32.totalorder %s20, 0
        %s214 = scalar_select %p213, %s20, 0
        %s215 = sadd.s32 %s214, %s212
        %s216 = smul.addr %s215, 8
        %s217 = scalar_lea.vmem %s3, %s216
        %p218 = scmp.lt.s32.totalorder %s19, 2
        %s219 = scalar_select %p218, %s19, 2
        %p220 = scmp.lt.s32.totalorder %s20, 0
        %s221 = scalar_select %p220, %s20, 0
        %s222 = smul.addr %s219, 9
        %s223 = sadd.s32 %s221, %s222
        %s224 = scalar_lea.vmem %s0, %s223
        %p225 = scmp.lt.s32.totalorder %s19, 2
        %s226 = scalar_select %p225, %s19, 2
        %p227 = scmp.lt.s32.totalorder %s20, 0
        %s228 = scalar_select %p227, %s20, 0
        %s229 = smul.addr %s226, 6
        %s230 = sadd.s32 %s228, %s229
        %s231 = scalar_lea.vmem %s1, %s230
        %p232 = scmp.lt.s32.totalorder %s19, 2
        %s233 = scalar_select %p232, %s19, 2
        %p234 = scmp.lt.s32.totalorder %s20, 0
        %s235 = scalar_select %p234, %s20, 0
        %s236 = sadd.s32 %s235, %s233
        %s237 = smul.addr %s236, 8
        %s238 = scalar_lea.vmem %s3, %s237
        %s239 = smul.u32 %s19, 128
        %s240 = sld [smem:[#allocation2 + %s239]]
        %s241 = sadd.s32 %s239, 1
        %s242 = sld [smem:[#allocation2 + %s241]]
        %s243 = sadd.s32 %s239, 2
        %s244 = sld [smem:[#allocation2 + %s243]]
        %s245 = sadd.s32 %s239, 3
        %s246 = sld [smem:[#allocation2 + %s245]]
        %v247 = vld [vmem:[%s231] sm:$0x1]
        %vm248 = vcmp.eq.f32.partialorder %v247, 1.0
        %vm249 = vcmp.eq.f32.partialorder %v247, 0.0
        %v250 = vld [vmem:[%s224] sm:$0x1]
        %v251 = vmax.f32 %v250, 0.0
        %v252 = vand.u32 2147483647, %v250
        %v253 = vsub.f32 0.0, %v252
        %v254 = vmul.f32 %v253, 1.442695
        %v255 = vpow.pop %v254
        %v256 = vadd.f32 %v255, 1.0
        %v257 = vlog2.pop %v256
        %v258 = vmul.f32 %v257, 0.6931472
        %v259 = vmul.f32 -0.5, %v255
        %v260 = vadd.f32 %v259, 1.0
        %v261 = vmul.f32 %v260, %v255
        %v262 = vand.u32 2147483647, %v255
        %vm263 = vcmp.lt.f32.partialorder %v262, 0.0004427343
        %v264 = vsel %vm263, %v261, %v258
        %v265 = vadd.f32 %v251, %v264
        %v266 = vsel %vm249, %v265, 0.0
        %s267 = scalar_lea.vmem %s224, 1
        %v268 = vld [vmem:[%s267] sm:$0x1]
        %s269 = scalar_lea.vmem %s224, 2
        %v270 = vld [vmem:[%s269] sm:$0x1]
        %s271 = scalar_lea.vmem %s224, 3
        %v272 = vld [vmem:[%s271] sm:$0x1]
        %s273 = scalar_lea.vmem %s224, 4
        %v274 = vld [vmem:[%s273] sm:$0x1]
        %v275 = vsub.f32 0.0, %v268
        %v276 = vmul.f32 %v275, 1.442695
        %v277 = vpow.pop %v276
        %v278 = vadd.f32 %v277, 1.0
        %v279 = vrcp.pop %v278
        %v280 = vsub.f32 0.0, %v270
        %v281 = vmul.f32 %v280, 1.442695
        %v282 = vpow.pop %v281
        %v283 = vadd.f32 %v282, 1.0
        %v284 = vrcp.pop %v283
        %v285 = vmul.f32 %v272, 1.442695
        %v286 = vpow.pop %v285
        %v287 = vstv %s240
        %v288 = vmul.f32 %v286, %v287
        %v289 = vmul.f32 %v274, 1.442695
        %v290 = vpow.pop %v289
        %v291 = vstv %s242
        %v292 = vmul.f32 %v290, %v291
        %s293 = scalar_lea.vmem %s231, 1
        %v294 = vld [vmem:[%s293] sm:$0x1]
        %s295 = scalar_lea.vmem %s231, 2
        %v296 = vld [vmem:[%s295] sm:$0x1]
        %s297 = scalar_lea.vmem %s231, 3
        %v298 = vld [vmem:[%s297] sm:$0x1]
        %s299 = scalar_lea.vmem %s231, 4
        %v300 = vld [vmem:[%s299] sm:$0x1]
        %v301 = vmul.f32 %v288, 0.5
        %v302 = vadd.f32 %v279, %v301
        %v303 = vmul.f32 %v298, 0.5
        %v304 = vadd.f32 %v294, %v303
        %v305 = vmin.f32 %v302, %v304
        %v306 = vsub.f32 %v279, %v301
        %v307 = vsub.f32 %v294, %v303
        %v308 = vmax.f32 %v306, %v307
        %v309 = vsub.f32 %v305, %v308
        %v310 = vmax.f32 %v309, 0.0
        %v311 = vmul.f32 %v292, 0.5
        %v312 = vadd.f32 %v284, %v311
        %v313 = vmul.f32 %v300, 0.5
        %v314 = vadd.f32 %v296, %v313
        %v315 = vmin.f32 %v312, %v314
        %v316 = vsub.f32 %v284, %v311
        %v317 = vsub.f32 %v296, %v313
        %v318 = vmax.f32 %v316, %v317
        %v319 = vsub.f32 %v315, %v318
        %v320 = vmax.f32 %v319, 0.0
        %v321 = vmul.f32 %v310, %v320
        %v322 = vmul.f32 %v288, %v292
        %v323 = vand.u32 2147483647, %v322
        %v324 = vmul.f32 %v298, %v300
        %v325 = vand.u32 2147483647, %v324
        %v326 = vadd.f32 %v323, %v325
        %v327 = vsub.f32 %v326, %v321
        %v328 = vadd.f32 %v327, 1e-06
        %v329 = vrcp.pop %v328
        %v330 = vmul.f32 %v321, %v329
        %v331 = vmul.f32 %v250, %v330
        %v332 = vsub.f32 %v265, %v331
        %v333 = vsel %vm248, %v332, 0.0
        %v334 = vsel %vm248, %v298, %v287
        %v335 = vstv %s244
        %v336 = vmul.f32 %v334, %v335
        %v337 = vadd.f32 %v336, 1e-06
        %v338 = vlog2.pop %v337
        %v339 = vmul.f32 %v338, 0.6931472
        %v340 = vsel %vm248, %v300, %v291
        %v341 = vstv %s246
        %v342 = vmul.f32 %v340, %v341
        %v343 = vadd.f32 %v342, 1e-06
        %v344 = vlog2.pop %v343
        %v345 = vmul.f32 %v344, 0.6931472
        %v346 = vsub.f32 %v279, %v294
        %v347 = vmul.f32 %v346, %v346
        %v348 = vsub.f32 %v284, %v296
        %v349 = vmul.f32 %v348, %v348
        %v350 = vadd.f32 %v347, %v349
        %v351 = vsub.f32 %v272, %v339
        %v352 = vmul.f32 %v351, %v351
        %v353 = vadd.f32 %v350, %v352
        %v354 = vsub.f32 %v274, %v345
        %v355 = vmul.f32 %v354, %v354
        %v356 = vadd.f32 %v353, %v355
        %v357 = vsel %vm248, %v356, 0.0
        %s358 = scalar_lea.vmem %s231, 5
        %v359 = vld [vmem:[%s358] sm:$0x1]
        %s360 = scalar_lea.vmem %s224, 5
        %v361 = vld [vmem:[%s360] sm:$0x1]
        %s362 = scalar_lea.vmem %s224, 6
        %v363 = vld [vmem:[%s362] sm:$0x1]
        %s364 = scalar_lea.vmem %s224, 7
        %v365 = vld [vmem:[%s364] sm:$0x1]
        %s366 = scalar_lea.vmem %s224, 8
        %v367 = vld [vmem:[%s366] sm:$0x1]
        %v368 = vmax.f32 %v361, %v363
        %v369 = vmax.f32 %v368, %v365
        %v370 = vmax.f32 %v369, %v367
        %v371 = vsub.f32 %v361, %v370
        %v372 = vmul.f32 %v371, 1.442695
        %v373 = vpow.pop %v372
        %v374 = vadd.f32 %v373, 0.0
        %vm375 = vcmp.eq.f32.partialorder %v359, 0.0
        %v376 = vsel %vm375, %v361, 0.0
        %v377 = vadd.f32 %v376, 0.0
        %v378 = vsub.f32 %v363, %v370
        %v379 = vmul.f32 %v378, 1.442695
        %v380 = vpow.pop %v379
        %v381 = vadd.f32 %v374, %v380
        %vm382 = vcmp.eq.f32.partialorder %v359, 1.0
        %v383 = vsel %vm382, %v363, 0.0
        %v384 = vadd.f32 %v377, %v383
        %v385 = vsub.f32 %v365, %v370
        %v386 = vmul.f32 %v385, 1.442695
        %v387 = vpow.pop %v386
        %v388 = vadd.f32 %v381, %v387
        %vm389 = vcmp.eq.f32.partialorder %v359, 2.0
        %v390 = vsel %vm389, %v365, 0.0
        %v391 = vadd.f32 %v384, %v390
        %v392 = vsub.f32 %v367, %v370
        %v393 = vmul.f32 %v392, 1.442695
        %v394 = vpow.pop %v393
        %v395 = vadd.f32 %v388, %v394
        %vm396 = vcmp.eq.f32.partialorder %v359, 3.0
        %v397 = vsel %vm396, %v367, 0.0
        %v398 = vadd.f32 %v391, %v397
        %v399 = vlog2.pop %v395
        %v400 = vmul.f32 %v399, 0.6931472
        %v401 = vadd.f32 %v370, %v400
        %v402 = vsub.f32 %v401, %v398
        %v403 = vsel %vm248, %v402, 0.0
        %v404 = vsel %vm249, 1, 0
        %v405 = vcvt.s32.f32 %v404
        %v406 = vadd.f32 %v405, 0.0
        %v407 = vadd.f32 %v266, 0.0
        %v408 = vsel %vm248, 1, 0
        %v409 = vcvt.s32.f32 %v408
        %v410 = vadd.f32 %v409, 0.0
        %v411 = vadd.f32 %v333, 0.0
        %v412 = vadd.f32 %v357, 0.0
        %v413 = vadd.f32 %v403, 0.0
        %v414 = vadd.f32 %v406, 0.0
        %v415 = vadd.f32 %v407, 0.0
        %v416 = vadd.f32 %v410, 0.0
        %v417 = vadd.f32 %v411, 0.0
        %v418 = vadd.f32 %v412, 0.0
        %v419 = vadd.f32 %v413, 0.0
        %v421 = vlaneseq
        %v422 = vshrl.u32 %v421, 7
        %v423 = vsub.s32 0, %v422
        %v424 = vrot.slane %v415, %v423
        %v427 = vlaneseq
        %v428 = vshrl.u32 %v427, 7
        %v429 = vsub.s32 0, %v428
        %v430 = vrot.slane %v416, %v429
        %v433 = vlaneseq
        %v434 = vshrl.u32 %v433, 7
        %v435 = vsub.s32 0, %v434
        %v436 = vrot.slane %v417, %v435
        %v439 = vlaneseq
        %v440 = vshrl.u32 %v439, 7
        %v441 = vsub.s32 0, %v440
        %v442 = vrot.slane %v418, %v441
        %v445 = vlaneseq
        %v446 = vshrl.u32 %v445, 7
        %v447 = vsub.s32 0, %v446
        %v448 = vrot.slane %v419, %v447
        %vm450 = vcmask 1040384
        %v451 = vsel %vm450, %v414, %v424
        %vm452 = vcmask 1041408
        %v453 = vsel %vm452, %v451, %v430
        %vm454 = vcmask 1042432
        %v455 = vsel %vm454, %v453, %v436
        %vm456 = vcmask 1043456
        %v457 = vsel %vm456, %v455, %v442
        %vm458 = vcmask 1044480
        %v459 = vsel %vm458, %v457, %v448
        %vm460 = vcmask 1045504
        %v461 = vsel %vm460, %v459, 0.0
        %462 = vst [vmem:[%s238] sm:$0xff] %v461
        %p463 = scmp.lt.s32.totalorder %s19, 2
        %s464 = scalar_select %p463, %s19, 2
        %p465 = scmp.lt.s32.totalorder %s20, 0
        %s466 = scalar_select %p465, %s20, 0
        %s467 = sadd.s32 %s466, %s464
        %s468 = smul.addr %s467, 8
        %s469 = scalar_lea.vmem %s3, %s468
        // Predicated region
        $region37: #{yolo_loss.1} parent=31 // pred_check
          %p470 = pneg %p124
        $region38: #{yolo_loss.1} parent=31 // pred_check_branch
          %472 = sbr.rel (%p470) target = $region40
        $region39: #{yolo_loss.1} parent=31 // pred_region
          _
        $region40: #{yolo_loss.1} parent=31 // pred_fallthru
          _
      $region32: #{yolo_loss.1} parent=5 // pred_fallthru
        _
      %p473 = scmp.le.s32.totalorder 2, %s10
      // Predicated region
      $region41: #{yolo_loss.1} parent=5 // pred_check
        %p474 = pneg %p473
      $region42: #{yolo_loss.1} parent=5 // pred_check_branch
        %476 = sbr.rel (%p474) target = $region44
      $region43: #{yolo_loss.1} parent=5 // pred_region
        %s477 = ssub.s32 %s10, 2
        // Predicated region
        $region45: #{yolo_loss.1} parent=43 // pred_check
          %p478 = pneg %p130
        $region46: #{yolo_loss.1} parent=43 // pred_check_branch
          %480 = sbr.rel (%p478) target = $region48
        $region47: #{yolo_loss.1} parent=43 // pred_region
          %p481 = scmp.lt.s32.totalorder %s21, 2
          %s482 = scalar_select %p481, %s21, 2
          %p483 = scmp.lt.s32.totalorder %s22, 0
          %s484 = scalar_select %p483, %s22, 0
          %s485 = sadd.s32 %s484, %s482
          %s486 = smul.addr %s485, 8
          %s487 = scalar_lea.vmem %s3, %s486
        $region48: #{yolo_loss.1} parent=43 // pred_fallthru
          _
      $region44: #{yolo_loss.1} parent=5 // pred_fallthru
        _
    $region6: #{yolo_loss.1} parent=1 // loop_footer
      %s14 = sadd.s32 1, %s10
    $region7: #{yolo_loss.1} parent=1 // loop_footer_branch
      %9 = sbr.rel target = $region3
    $region8: #{yolo_loss.1} parent=1 // loop_exit
      _
    %488 = vsyncpa [#allocation3], 1
    %s489 = scalar_lea.sflag [#allocation3], 1
    %490 = vsyncpa %s489, 1

</llo_original>
